<compile_context>
chip_gen: v6e
topology: v6e:2x2x1
jax: 0.10.0
libtpu: 0.0.40
codegen_flags: <defaults>
</compile_context>

<pallas_src>
import functools

import jax
import jax.numpy as jnp
from jax.experimental import pallas as pl
from jax.experimental.pallas import tpu as pltpu


def _round_up(v, m):
    return ((v + m - 1) // m) * m


def _ce_flat_kernel(logits_ref, labels_ref, out_ref, *, n_rows, tm, inv_n):
    # logits_ref: (tm, C) native dtype; labels_ref: (tm, 1) i32;
    # out_ref: (1, 8, 128) f32 per-tile partial slab (lane-dense).
    tile = pl.program_id(0)

    x = logits_ref[...]                                             # native dtype
    labels = labels_ref[...]                                        # (tm, 1) i32

    # Max and one-hot label pick on the raw tile in its native dtype
    # (exact in bf16; lets Mosaic fuse the iota/cmp/select with the max pass).
    m = jnp.max(x, axis=-1, keepdims=True)                          # (tm, 1)
    col = jax.lax.broadcasted_iota(jnp.int32, x.shape, 1)           # (tm, C)
    picked = jnp.sum(jnp.where(col == labels, x, jnp.zeros_like(x)),
                     axis=-1, keepdims=True)                        # (tm, 1)

    # Upcast only for the exp / accumulate (numerics).
    m32 = m.astype(jnp.float32)
    shifted = x.astype(jnp.float32) - m32                           # (tm, C) f32
    lse = jnp.log(jnp.sum(jnp.exp(shifted), axis=-1, keepdims=True))  # (tm, 1)
    losses = m32 + lse - picked.astype(jnp.float32)                 # per-row NLL

    # Mask rows past N (only the last, partial tile has any) BEFORE the tile
    # reduce, so OOB-garbage rows (possibly NaN/inf) never reach the sum.
    row = tile * tm + jax.lax.broadcasted_iota(jnp.int32, (tm, 1), 0)
    losses = jnp.where(row < n_rows, losses, 0.0)

    partial = jnp.sum(losses) * inv_n
    out_ref[...] = jnp.full(out_ref.shape, partial, dtype=jnp.float32)


def _ce_tiled_kernel(logits_ref, labels_ref, out_ref, m_sc, s_sc, p_sc, *,
                     n_rows, n_cols, tm, tc, inv_n):
    # Vocab-scale-C path: online logsumexp over class tiles.
    # logits_ref: (tm, tc) native dtype; labels_ref: (tm, 1) i32;
    # out_ref: (1, 8, 128) f32; m_sc/s_sc/p_sc: (tm, 1) f32 scratch.
    i = pl.program_id(0)
    k = pl.program_id(1)

    @pl.when(k == 0)
    def _():
        m_sc[...] = jnp.full_like(m_sc, -jnp.inf)
        s_sc[...] = jnp.zeros_like(s_sc)
        p_sc[...] = jnp.zeros_like(p_sc)

    x = logits_ref[...]                                             # (tm, tc)
    labels = labels_ref[...]                                        # (tm, 1)

    col = k * tc + jax.lax.broadcasted_iota(jnp.int32, x.shape, 1)  # global cols
    col_ok = col < n_cols                                           # mask C%tc pad

    # One-hot label pick on the raw tile (native dtype, exact); padded columns
    # (col >= n_cols) can never match a valid label.
    picked = jnp.sum(jnp.where(col == labels, x, jnp.zeros_like(x)),
                     axis=-1, keepdims=True).astype(jnp.float32)
    p_sc[...] = p_sc[...] + picked

    # Online max / sum-exp in f32; padded columns forced to -inf (exp -> 0).
    xf = jnp.where(col_ok, x.astype(jnp.float32), -jnp.inf)
    mb = jnp.max(xf, axis=-1, keepdims=True)
    m_prev = m_sc[...]
    m_new = jnp.maximum(m_prev, mb)
    s_sc[...] = (s_sc[...] * jnp.exp(m_prev - m_new)
                 + jnp.sum(jnp.exp(xf - m_new), axis=-1, keepdims=True))
    m_sc[...] = m_new

    @pl.when(k == pl.num_programs(1) - 1)
    def _():
        losses = m_sc[...] + jnp.log(s_sc[...]) - p_sc[...]
        # Per-row mask BEFORE the tile reduce (OOB rows may hold NaN/inf).
        row = i * tm + jax.lax.broadcasted_iota(jnp.int32, (tm, 1), 0)
        losses = jnp.where(row < n_rows, losses, 0.0)
        out_ref[...] = jnp.full(out_ref.shape, jnp.sum(losses) * inv_n,
                                dtype=jnp.float32)


def cross_entropy_loss(logits, labels, *, block_rows=None,
                       class_block=2048, class_tile_threshold=4096):
    """logits: (N, C) float (f32 or bf16); labels: (N,) int. Returns scalar f32.

    Matches nn.CrossEntropyLoss()(logits, labels) followed by torch.mean.
    """
    # TODO(synk): ignore_index=-100 / class weights / label_smoothing of
    # nn.CrossEntropyLoss are not implemented (defaults, in-range labels).
    n, c = logits.shape
    labels2d = labels.astype(jnp.int32).reshape(n, 1)

    itemsize = jnp.dtype(logits.dtype).itemsize
    # Native sublane-packed row multiple: 8 for f32, 16 for bf16, 32 for 8-bit.
    row_mult = max(8, 32 // itemsize)

    # Vocab-scale C: switch to class-tiled online logsumexp (keeps per-tile
    # f32 temporaries small enough for v7x's 64 MiB VMEM at C=128K-256K).
    use_class_tiling = (c > class_tile_threshold) and (c >= 256)
    tc = min(class_block, (c // 128) * 128) if use_class_tiling else c

    if block_rows is None:
        # ~1 MiB streamed-input tile; with 2x double-buffered inputs plus
        # ~4-5 (tm,tc) f32 temporaries this stays inside the DEFAULT scoped
        # VMEM on v5e (16 MiB), v6e (32 MiB) and v7x (32 MiB) with headroom.
        budget_bytes = 1 << 20
        block_rows = max(row_mult,
                         (budget_bytes // (itemsize * tc)) // row_mult * row_mult)
        if n <= row_mult:
            block_rows = n
        else:
            # Cap at ~ceil(N/2) so the 'parallel' batch axis has >= 2 tiles
            # and can shard across both v7x TensorCores.
            half = _round_up(pl.cdiv(n, 2), row_mult)
            block_rows = min(block_rows, half, _round_up(n, row_mult))
    tm = block_rows
    num_row_tiles = pl.cdiv(n, tm)
    inv_n = 1.0 / n

    cost = pl.CostEstimate(
        flops=6 * n * c,
        transcendentals=n * c,
        bytes_accessed=n * c * itemsize + n * 4 + num_row_tiles * 8 * 128 * 4)

    out_shape = jax.ShapeDtypeStruct((num_row_tiles, 8, 128), jnp.float32)

    if not use_class_tiling:
        kernel = functools.partial(_ce_flat_kernel, n_rows=n, tm=tm, inv_n=inv_n)
        partials = pl.pallas_call(
            kernel,
            out_shape=out_shape,
            grid=(num_row_tiles,),
            in_specs=[
                # TODO(synk): if xprof shows exposed DMA on v5e, try
                # pipeline_mode=pl.Buffered(3) on this logits spec.
                pl.BlockSpec((tm, c), lambda i: (i, 0)),
                pl.BlockSpec((tm, 1), lambda i: (i, 0)),
            ],
            out_specs=pl.BlockSpec((1, 8, 128), lambda i: (i, 0, 0)),
            compiler_params=pltpu.CompilerParams(
                dimension_semantics=("parallel",)),
            cost_estimate=cost,
        )(logits, labels2d)
    else:
        num_class_tiles = pl.cdiv(c, tc)
        kernel = functools.partial(_ce_tiled_kernel, n_rows=n, n_cols=c,
                                   tm=tm, tc=tc, inv_n=inv_n)
        partials = pl.pallas_call(
            kernel,
            out_shape=out_shape,
            grid=(num_row_tiles, num_class_tiles),     # class (reduction) axis last
            in_specs=[
                pl.BlockSpec((tm, tc), lambda i, k: (i, k)),
                pl.BlockSpec((tm, 1), lambda i, k: (i, 0)),
            ],
            out_specs=pl.BlockSpec((1, 8, 128), lambda i, k: (i, 0, 0)),
            scratch_shapes=[pltpu.VMEM((tm, 1), jnp.float32),   # running max
                            pltpu.VMEM((tm, 1), jnp.float32),   # running sumexp
                            pltpu.VMEM((tm, 1), jnp.float32)],  # running picked
            compiler_params=pltpu.CompilerParams(
                dimension_semantics=("parallel", "arbitrary")),
            cost_estimate=cost,
        )(logits, labels2d)

    # Tiny final reduce over per-tile partials (already scaled by 1/N).
    return jnp.sum(partials[:, 0, 0])


def _reference(logits, labels):
    log_probs = jax.nn.log_softmax(logits.astype(jnp.float32), axis=-1)
    return -jnp.mean(jnp.take_along_axis(log_probs, labels[:, None], axis=-1))


if __name__ == "__main__":
    key = jax.random.PRNGKey(0)
    k1, k2, k3, k4, k5, k6, k7, k8 = jax.random.split(key, 8)

    # Primary: small shapes consistent with the module (batch=8, classes=32).
    N, C = 8, 32
    logits = jax.random.normal(k1, (N, C), dtype=jnp.float32)
    labels = jax.random.randint(k2, (N,), 0, C, dtype=jnp.int32)
    loss = cross_entropy_loss(logits, labels)
    jax.block_until_ready(loss)
    ref = _reference(logits, labels)
    assert jnp.allclose(loss, ref, atol=1e-5, rtol=1e-5), (loss, ref)

    # Multi-tile + partial-last-row-tile mask path (user-provided block_rows).
    N2, C2 = 200, 256
    logits2 = jax.random.normal(k3, (N2, C2), dtype=jnp.float32)
    labels2 = jax.random.randint(k4, (N2,), 0, C2, dtype=jnp.int32)
    loss2 = cross_entropy_loss(logits2, labels2, block_rows=64)
    jax.block_until_ready(loss2)
    ref2 = _reference(logits2, labels2)
    assert jnp.allclose(loss2, ref2, atol=1e-5, rtol=1e-5), (loss2, ref2)

    # bf16 logits: native-dtype max / label pick, f32 exp; 16-row tiling.
    N3, C3 = 48, 128
    logits3 = jax.random.normal(k5, (N3, C3), dtype=jnp.bfloat16)
    labels3 = jax.random.randint(k6, (N3,), 0, C3, dtype=jnp.int32)
    loss3 = cross_entropy_loss(logits3, labels3)
    jax.block_until_ready(loss3)
    ref3 = _reference(logits3, labels3)
    assert jnp.allclose(loss3, ref3, atol=1e-4, rtol=1e-4), (loss3, ref3)

    # Large-C path: class-tiled online logsumexp (C not a multiple of the
    # class tile, exercising both the column mask and the row mask).
    N4, C4 = 24, 5000
    logits4 = jax.random.normal(k7, (N4, C4), dtype=jnp.float32)
    labels4 = jax.random.randint(k8, (N4,), 0, C4, dtype=jnp.int32)
    loss4 = cross_entropy_loss(logits4, labels4)
    jax.block_until_ready(loss4)
    ref4 = _reference(logits4, labels4)
    assert jnp.allclose(loss4, ref4, atol=1e-5, rtol=1e-5), (loss4, ref4)

    print("KERNEL_OK")
</pallas_src>

<mosaic_0001>
module attributes {stable_mosaic.version = 11 : i64} {
  func.func @_ce_flat_kernel(%arg0: i32, %arg1: memref<8x32xf32, #tpu.memory_space<vmem>>, %arg2: memref<8x1xi32, #tpu.memory_space<vmem>>, %arg3: memref<1x8x128xf32, #tpu.memory_space<vmem>>) attributes {dimension_semantics = [#tpu.dimension_semantics<parallel>], iteration_bounds = array<i64: 1>, scalar_prefetch = 0 : i64, scratch_operands = 0 : i64, tpu.core_type = #tpu.core_type<tc>, window_params = [{transform_indices = @transform_0, window_bounds = array<i64: 8, 32>}, {transform_indices = @transform_1, window_bounds = array<i64: 8, 1>}, {transform_indices = @transform_2, window_bounds = array<i64: 1, 8, 128>}]} {
    %c0 = arith.constant 0 : index
    %c0_0 = arith.constant 0 : index
    %0 = vector.load %arg1[%c0, %c0_0] : memref<8x32xf32, #tpu.memory_space<vmem>>, vector<8x32xf32>
    %c0_1 = arith.constant 0 : index
    %c0_2 = arith.constant 0 : index
    %1 = vector.load %arg2[%c0_1, %c0_2] : memref<8x1xi32, #tpu.memory_space<vmem>>, vector<8x1xi32>
    %cst = arith.constant dense<0xFF800000> : vector<8xf32>
    %2 = vector.multi_reduction <maximumf>, %0, %cst [1] : vector<8x32xf32> to vector<8xf32>
    %3 = vector.shape_cast %2 : vector<8xf32> to vector<8x1xf32>
    %4 = tpu.iota {dimensions = array<i32: 1>} : vector<8x32xi32>
    %5 = vector.broadcast %1 : vector<8x1xi32> to vector<8x32xi32>
    %6 = arith.cmpi eq, %4, %5 : vector<8x32xi32>
    %cst_3 = arith.constant 0.000000e+00 : f32
    %7 = vector.broadcast %cst_3 : f32 to vector<8x32xf32>
    %8 = arith.select %6, %0, %7 : vector<8x32xi1>, vector<8x32xf32>
    %cst_4 = arith.constant dense<0.000000e+00> : vector<8xf32>
    %9 = vector.multi_reduction <add>, %8, %cst_4 [1] : vector<8x32xf32> to vector<8xf32>
    %10 = vector.shape_cast %9 : vector<8xf32> to vector<8x1xf32>
    %11 = vector.broadcast %3 : vector<8x1xf32> to vector<8x32xf32>
    %12 = arith.subf %0, %11 : vector<8x32xf32>
    %13 = math.exp %12 : vector<8x32xf32>
    %cst_5 = arith.constant dense<0.000000e+00> : vector<8xf32>
    %14 = vector.multi_reduction <add>, %13, %cst_5 [1] : vector<8x32xf32> to vector<8xf32>
    %15 = vector.shape_cast %14 : vector<8xf32> to vector<8x1xf32>
    %16 = math.log %15 : vector<8x1xf32>
    %17 = arith.addf %3, %16 : vector<8x1xf32>
    %18 = arith.subf %17, %10 : vector<8x1xf32>
    %c8_i32 = arith.constant 8 : i32
    %19 = arith.muli %arg0, %c8_i32 : i32
    %20 = tpu.iota {dimensions = array<i32: 0>} : vector<8x1xi32>
    %21 = vector.broadcast %19 : i32 to vector<8x1xi32>
    %22 = arith.addi %21, %20 : vector<8x1xi32>
    %c8_i32_6 = arith.constant 8 : i32
    %23 = vector.broadcast %c8_i32_6 : i32 to vector<8x1xi32>
    %24 = arith.cmpi slt, %22, %23 : vector<8x1xi32>
    %cst_7 = arith.constant 0.000000e+00 : f32
    %25 = vector.broadcast %cst_7 : f32 to vector<8x1xf32>
    %26 = arith.select %24, %18, %25 : vector<8x1xi1>, vector<8x1xf32>
    %27 = vector.shape_cast %26 : vector<8x1xf32> to vector<1x8x1xf32>
    %cst_8 = arith.constant dense<0.000000e+00> : vector<1xf32>
    %28 = vector.multi_reduction <add>, %27, %cst_8 [1, 2] : vector<1x8x1xf32> to vector<1xf32>
    %29 = vector.shape_cast %28 : vector<1xf32> to vector<1x1x1xf32>
    %30 = vector.extract %29[0, 0, 0] : f32 from vector<1x1x1xf32>
    %cst_9 = arith.constant 1.250000e-01 : f32
    %31 = arith.mulf %30, %cst_9 : f32
    %32 = vector.broadcast %31 : f32 to vector<1x8x128xf32>
    %c0_10 = arith.constant 0 : index
    %c0_11 = arith.constant 0 : index
    %c0_12 = arith.constant 0 : index
    %33 = vector.load %arg3[%c0_10, %c0_11, %c0_12] : memref<1x8x128xf32, #tpu.memory_space<vmem>>, vector<1x8x128xf32>
    tpu.vector_store %arg3[%c0_10, %c0_11, %c0_12], %32 {strides = array<i32>} : memref<1x8x128xf32, #tpu.memory_space<vmem>>, vector<1x8x128xf32>,
    return
  }
  func.func @transform_0(%arg0: i32) -> (i32, i32) {
    %c0_i32 = arith.constant 0 : i32
    %c0_i32_0 = arith.constant 0 : i32
    return %arg0, %c0_i32 : i32, i32
  }
  func.func @transform_1(%arg0: i32) -> (i32, i32) {
    %c0_i32 = arith.constant 0 : i32
    %c0_i32_0 = arith.constant 0 : i32
    return %arg0, %c0_i32 : i32, i32
  }
  func.func @transform_2(%arg0: i32) -> (i32, i32, i32) {
    %c0_i32 = arith.constant 0 : i32
    %c0_i32_0 = arith.constant 0 : i32
    %c0_i32_1 = arith.constant 0 : i32
    return %arg0, %c0_i32, %c0_i32_0 : i32, i32, i32
  }
}

</mosaic_0001>

<llo_original>
// kernel: tpu_custom_call.1
$region0: #{tpu_custom_call.1}
  #allocation0 [shape = 'u32[]', space=smem, size = 0x4, offset = 0x4, fixed_abs, tag = 'smem constant byte address 0x4 - core index']
  #allocation1 [shape = 'u32[144,128]{1,0:T(1,128)}', space=vmem, size = 0x12000, scoped, tag = 'internal scratch']
  %s0 = inlined_call_operand.vmem [shape: f32[8,32], index: 0, kind: input, shape index: {}]
  %s1 = inlined_call_operand.vmem [shape: s32[8,1], index: 1, kind: input, shape index: {}]
  %s2 = inlined_call_operand.hbm [shape: f32[1,8,128], index: 2, kind: output, shape index: {}]
  %s3 = sld [smem:[#allocation0]]
  $region18: #{tpu_custom_call.1} parent=0
    _
  %s5 = ssub.s32 1, %s3
  %s6 = scalar_select 0, %s5, %s3
  $region1: #{tpu_custom_call.1} parent=0
    #allocation2 [shape = 'u8[4096]{0}', space=vmem, size = 0x1000, scoped, tag = 'output window, operand 0, single buffered']
    #allocation3 [shape = 's32[1]{0}', space=sflag, size = 0x4, scoped, tag = 'scoped memory for tpu_custom_call.1']
    %7 = vsyncpa [#allocation3], 0
    // Predicated region
    $region2: #{tpu_custom_call.1} parent=1 // pred_check
      _
    $region3: #{tpu_custom_call.1} parent=1 // pred_check_branch
      %9 = sbr.rel (0) target = $region5
    $region4: #{tpu_custom_call.1} parent=1 // pred_region
      _
    $region5: #{tpu_custom_call.1} parent=1 // pred_fallthru
      _
    // Predicated region
    $region6: #{tpu_custom_call.1} parent=1 // pred_check
      _
    $region7: #{tpu_custom_call.1} parent=1 // pred_check_branch
      %11 = sbr.rel (0) target = $region9
    $region8: #{tpu_custom_call.1} parent=1 // pred_region
      _
    $region9: #{tpu_custom_call.1} parent=1 // pred_fallthru
      _
    %v12 = vld [vmem:[%s0] sm:$0xff]
    %v13 = vld [vmem:[%s1] sm:$0xff]
    %vm14 = vcmask 261120
    %v15 = vsel %vm14, %v12, -inf
    %16 = vmax.xlane.f32.xlu0 %v15
    %v17 = vpop.xlane.xlu0 %16
    %v18 = vlaneseq
    %v19 = vand.u32 %v18, 127
    %20 = vset.pattern.permute.xlu0 0
    %21 = vperm.xlu0 %20, %v13
    %v22 = vpop.permute.xlu0 %21
    %vm23 = vcmp.eq.s32.totalorder %v19, %v22
    %v24 = vsel %vm23, %v12, 0.0
    %v25 = vsel %vm14, %v24, 0.0
    %26 = vadd.xlane.f32.xlu0 %v25
    %v27 = vpop.xlane.xlu0 %26
    %v28 = vsub.f32 %v12, %v17
    %v29 = vmul.f32 %v28, 1.442695
    %v30 = vpow.pop %v29
    %v31 = vsel %vm14, %v30, 0.0
    %32 = vadd.xlane.f32.xlu0 %v31
    %v33 = vpop.xlane.xlu0 %32
    %v34 = vlog2.pop %v33
    %v35 = vmul.f32 %v34, 0.6931472
    %v36 = vadd.f32 %v17, %v35
    %v37 = vsub.f32 %v36, %v27
    %s38 = smul.u32 0, 8
    %v39 = vlaneseq
    %v40 = vshrl.u32 %v39, 7
    %v41 = vstv %s38
    %v42 = vadd.s32 %v41, %v40
    %vm43 = vcmp.lt.s32.totalorder %v42, 8
    %v44 = vsel %vm43, %v37, 0.0
    %vm45 = vcmask 7168
    %v46 = vsel %vm45, %v44, 0.0
    %47 = vadd.xlane.f32.xlu0 %v46
    %v48 = vpop.xlane.xlu0 %47
    %v49 = vrot.slane %v48, 4
    %v50 = vadd.f32 %v48, %v49
    %v51 = vrot.slane %v50, 2
    %v52 = vadd.f32 %v50, %v51
    %v53 = vrot.slane %v52, 1
    %v54 = vadd.f32 %v52, %v53
    %s55 = vtos %v54
    %s56 = smul.f32 %s55, 0.125
    %v57 = vstv %s56
    %58 = vst [vmem:[#allocation2] sm:$0xff] %v57
    // Predicated region
    $region10: #{tpu_custom_call.1} parent=1 // pred_check
      _
    $region11: #{tpu_custom_call.1} parent=1 // pred_check_branch
      %60 = sbr.rel (0) target = $region13
    $region12: #{tpu_custom_call.1} parent=1 // pred_region
      %s62 = ssub.s32 128, 128
      %63 = vsyncadd [#allocation3], %s62
      %s65 = sshll.u32 [#allocation2], 4
      %s66 = int_to_ptr.vmem [resolvable:$true] %s65
      %68 = dma.vmem_to_hbm [thread:$0]  %s66, 128, %s2, [#allocation3]
    $region13: #{tpu_custom_call.1} parent=1 // pred_fallthru
      _
    // Predicated region
    $region14: #{tpu_custom_call.1} parent=1 // pred_check
      _
    $region15: #{tpu_custom_call.1} parent=1 // pred_check_branch
      %70 = sbr.rel (0) target = $region17
    $region16: #{tpu_custom_call.1} parent=1 // pred_region
      %71 = dma.done [#allocation3], 128
    $region17: #{tpu_custom_call.1} parent=1 // pred_fallthru
      _
    %72 = vsyncpa [#allocation3], 1

</llo_original>
